<compile_context>
chip_gen: v6e
topology: v6e:2x2x1
jax: 0.10.0
libtpu: 0.0.40
codegen_flags: <defaults>
</compile_context>

<pallas_src>
import functools

import jax
import jax.numpy as jnp
from jax.experimental import pallas as pl
from jax.experimental.pallas import tpu as pltpu


def _round_up(x, m):
    return (x + m - 1) // m * m


def _pick_batch_tile(B, T, max_rows=1024):
    """Batch tile Bt dividing B.

    Whole batch for small problems (single grid step); for large B prefer a
    multiple-of-8 divisor so the (Bt, Cp) weak block satisfies the (8,128)
    tiling rule, keeps per-tile VMEM bounded, and leaves a 'parallel' grid
    axis > 1 for megacore sharding.
    """
    if B * T <= max_rows:
        return B
    best = B
    for bt in range(8, B + 1, 8):
        if B % bt == 0 and bt * T <= max_rows:
            best = bt
    return best


# ---------------------------------------------------------------------------
# Kernels
# ---------------------------------------------------------------------------
def _fused_att_head_kernel(x_ref, w_ref, b_ref, strong_ref, weak_ref):
    """One batch tile: fused (head|att) linear, sigmoid + softmax attention pool.

    Refs (current block views):
      x_ref:      (Bt, T, D)
      w_ref:      (D, 2*Cp)   [head_w | att_w], classes zero-padded to Cp
      b_ref:      (1, 2*Cp)   head bias padded with 0, att bias padded with -1e30
      strong_ref: (Bt, T, Cp) lane-dense; transposed/sliced in the wrapper
      weak_ref:   (Bt, Cp)
    """
    Bt, T, D = x_ref.shape
    Cp = strong_ref.shape[-1]

    # Single MXU call over M = Bt*T rows (collapse of leading dims only: cheap).
    x = x_ref[...].reshape(Bt * T, D)                       # (M, D)
    y = jnp.dot(x, w_ref[...], preferred_element_type=jnp.float32)
    y = y + b_ref[...]                                      # (M, 2*Cp)

    # head -> sigmoid  (lane slice at a 128-aligned boundary: tile-aligned)
    strong = jax.nn.sigmoid(y[:, :Cp])                      # (M, Cp)

    # att -> softmax over classes (padded classes carry -1e30 bias) -> clamp
    att = y[:, Cp:]                                         # (M, Cp)
    att = att - jnp.max(att, axis=-1, keepdims=True)
    e = jnp.exp(att)
    sof = e * pl.reciprocal(jnp.sum(e, axis=-1, keepdims=True), approx=True)
    sof = jnp.clip(sof, 1e-7, 1.0)

    # weak = sum_t(strong * sof) / sum_t(sof), per batch element
    num = jnp.sum((strong * sof).reshape(Bt, T, Cp), axis=1)  # (Bt, Cp)
    den = jnp.sum(sof.reshape(Bt, T, Cp), axis=1)             # (Bt, Cp)

    strong_ref[...] = strong.reshape(Bt, T, Cp).astype(strong_ref.dtype)
    weak_ref[...] = (num * pl.reciprocal(den, approx=True)).astype(weak_ref.dtype)


def _logits_kernel(x_ref, w_ref, b_ref, logits_ref):
    """One batch tile: single linear head (use_attention_head=False path)."""
    Bt, T, D = x_ref.shape
    Cp = logits_ref.shape[-1]
    x = x_ref[...].reshape(Bt * T, D)
    y = jnp.dot(x, w_ref[...], preferred_element_type=jnp.float32) + b_ref[...]
    logits_ref[...] = y.reshape(Bt, T, Cp).astype(logits_ref.dtype)


# ---------------------------------------------------------------------------
# Wrapper (parameter packing, padding, BlockSpecs, grid)
# ---------------------------------------------------------------------------
@functools.partial(jax.jit, static_argnames=("use_attention_head", "seq_len"))
def head_forward(x, params, *, use_attention_head=True, seq_len=8):
    """Pallas implementation of the wrapper's classification-head forward."""
    B, T, D = x.shape
    assert T == seq_len, "adaptive_avg_pool1d branch not implemented (TODO(synk))"

    wh = params["head_w"]          # (D, C)  == nn.Linear weight, pre-transposed
    bh = params["head_b"]          # (1, C)
    C = wh.shape[1]
    Cp = _round_up(C, 128)         # lane-dense output stores / MXU-friendly N
    pad_c = Cp - C

    Bt = _pick_batch_tile(B, T)
    grid = (B // Bt,)

    x_spec = pl.BlockSpec((Bt, T, D), lambda b: (b, 0, 0))

    if use_attention_head:
        wa = params["att_w"]       # (D, C)
        ba = params["att_b"]       # (1, C)

        # Fused + padded weights/bias: one (D, 2*Cp) matmul per tile.
        zw = jnp.zeros((D, pad_c), jnp.float32)
        w_fused = jnp.concatenate([wh, zw, wa, zw], axis=1)          # (D, 2*Cp)
        b_head = jnp.concatenate([bh, jnp.zeros((1, pad_c), jnp.float32)], axis=1)
        b_att = jnp.concatenate([ba, jnp.full((1, pad_c), -1e30, jnp.float32)], axis=1)
        b_fused = jnp.concatenate([b_head, b_att], axis=1)           # (1, 2*Cp)

        strong, weak = pl.pallas_call(
            _fused_att_head_kernel,
            out_shape=(
                jax.ShapeDtypeStruct((B, T, Cp), jnp.float32),
                jax.ShapeDtypeStruct((B, Cp), jnp.float32),
            ),
            grid_spec=pltpu.PrefetchScalarGridSpec(
                num_scalar_prefetch=0,
                grid=grid,
                in_specs=[
                    x_spec,
                    pl.BlockSpec((D, 2 * Cp), lambda b: (0, 0)),
                    pl.BlockSpec((1, 2 * Cp), lambda b: (0, 0)),
                ],
                out_specs=[
                    pl.BlockSpec((Bt, T, Cp), lambda b: (b, 0, 0)),
                    pl.BlockSpec((Bt, Cp), lambda b: (b, 0)),
                ],
            ),
            compiler_params=pltpu.CompilerParams(
                dimension_semantics=("parallel",)),
        )(x, w_fused, b_fused)

        # Un-pad classes and do the (1,2) swap outside the kernel (cheap XLA
        # layout plumbing; keeps the in-kernel stores lane-dense).
        strong = strong[:, :, :C]
        weak = weak[:, :C]
        return jnp.swapaxes(strong, 1, 2), weak

    # ---- plain logits path (as_model embedding head, use_attention_head=False)
    w_pad = jnp.concatenate([wh, jnp.zeros((D, pad_c), jnp.float32)], axis=1)
    b_pad = jnp.concatenate([bh, jnp.zeros((1, pad_c), jnp.float32)], axis=1)

    logits = pl.pallas_call(
        _logits_kernel,
        out_shape=jax.ShapeDtypeStruct((B, T, Cp), jnp.float32),
        grid_spec=pltpu.PrefetchScalarGridSpec(
            num_scalar_prefetch=0,
            grid=grid,
            in_specs=[
                x_spec,
                pl.BlockSpec((D, Cp), lambda b: (0, 0)),
                pl.BlockSpec((1, Cp), lambda b: (0, 0)),
            ],
            out_specs=pl.BlockSpec((Bt, T, Cp), lambda b: (b, 0, 0)),
        ),
        compiler_params=pltpu.CompilerParams(
            dimension_semantics=("parallel",)),
    )(x, w_pad, b_pad)
    return logits[:, :, :C]


# ---------------------------------------------------------------------------
# Pure-JAX reference (mirrors the PyTorch forward exactly)
# ---------------------------------------------------------------------------
def reference_forward(x, params, *, use_attention_head=True):
    logits = x @ params["head_w"] + params["head_b"]        # (B,T,C)
    if not use_attention_head:
        return logits
    strong = jax.nn.sigmoid(logits)
    sof = jax.nn.softmax(x @ params["att_w"] + params["att_b"], axis=-1)
    sof = jnp.clip(sof, 1e-7, 1.0)
    weak = (strong * sof).sum(1) / sof.sum(1)
    return jnp.swapaxes(strong, 1, 2), weak


# ---------------------------------------------------------------------------
# Main
# ---------------------------------------------------------------------------
if __name__ == "__main__":
    # Small shapes consistent with the module's head:
    #   nclass -> C, BiGRU feature dim (2*n_RNN_cell) -> D, frames -> T
    B, T, D, C = 2, 8, 32, 48

    key = jax.random.PRNGKey(0)
    kx, kwh, kbh, kwa, kba = jax.random.split(key, 5)

    # Deterministic init mimicking nn.Linear default: U(-1/sqrt(D), 1/sqrt(D)).
    bound = 1.0 / (D ** 0.5)
    params = {
        # Stored pre-transposed: (D, C) so the kernel does x @ W directly.
        "head_w": jax.random.uniform(kwh, (D, C), jnp.float32, -bound, bound),
        "head_b": jax.random.uniform(kbh, (1, C), jnp.float32, -bound, bound),
        "att_w": jax.random.uniform(kwa, (D, C), jnp.float32, -bound, bound),
        "att_b": jax.random.uniform(kba, (1, C), jnp.float32, -bound, bound),
    }

    # Backbone output (backbone treated as identity): (B, T, D)
    x = jax.random.normal(kx, (B, T, D), jnp.float32)

    # --- attention-head path (strong.T, weak) ---
    strong_t, weak = head_forward(x, params, use_attention_head=True, seq_len=T)
    jax.block_until_ready((strong_t, weak))

    ref_strong_t, ref_weak = reference_forward(x, params, use_attention_head=True)
    assert strong_t.shape == (B, C, T) and weak.shape == (B, C)
    assert jnp.allclose(strong_t, ref_strong_t, atol=1e-5, rtol=1e-5)
    # weak path uses EUP approx reciprocals (softmax denom + final divide):
    # tolerance relaxed accordingly.
    assert jnp.allclose(weak, ref_weak, atol=5e-3, rtol=5e-3)

    # --- plain logits path (use_attention_head=False) ---
    logits = head_forward(x, params, use_attention_head=False, seq_len=T)
    jax.block_until_ready(logits)
    ref_logits = reference_forward(x, params, use_attention_head=False)
    assert logits.shape == (B, T, C)
    assert jnp.allclose(logits, ref_logits, atol=1e-5, rtol=1e-5)

    print("KERNEL_OK")
</pallas_src>

<mosaic_0001>
module attributes {stable_mosaic.version = 11 : i64} {
  func.func @_fused_att_head_kernel(%arg0: i32, %arg1: memref<2x8x32xf32, #tpu.memory_space<vmem>>, %arg2: memref<32x256xf32, #tpu.memory_space<vmem>>, %arg3: memref<1x256xf32, #tpu.memory_space<vmem>>, %arg4: memref<2x8x128xf32, #tpu.memory_space<vmem>>, %arg5: memref<2x128xf32, #tpu.memory_space<vmem>>) attributes {dimension_semantics = [#tpu.dimension_semantics<parallel>], iteration_bounds = array<i64: 1>, scalar_prefetch = 0 : i64, scratch_operands = 0 : i64, tpu.core_type = #tpu.core_type<tc>, window_params = [{transform_indices = @transform_0, window_bounds = array<i64: 2, 8, 32>}, {pipeline_mode = #tpu.pipeline_mode<synchronous>, transform_indices = @transform_1, window_bounds = array<i64: 32, 256>}, {pipeline_mode = #tpu.pipeline_mode<synchronous>, transform_indices = @transform_2, window_bounds = array<i64: 1, 256>}, {transform_indices = @transform_3, window_bounds = array<i64: 2, 8, 128>}, {transform_indices = @transform_4, window_bounds = array<i64: 2, 128>}]} {
    %c0 = arith.constant 0 : index
    %c0_0 = arith.constant 0 : index
    %c0_1 = arith.constant 0 : index
    %0 = vector.load %arg1[%c0, %c0_0, %c0_1] : memref<2x8x32xf32, #tpu.memory_space<vmem>>, vector<2x8x32xf32>
    %1 = vector.shape_cast %0 : vector<2x8x32xf32> to vector<16x32xf32>
    %c0_2 = arith.constant 0 : index
    %c0_3 = arith.constant 0 : index
    %2 = vector.load %arg2[%c0_2, %c0_3] : memref<32x256xf32, #tpu.memory_space<vmem>>, vector<32x256xf32>
    %cst = arith.constant dense<0.000000e+00> : vector<16x256xf32>
    %3 = tpu.matmul %1, %2, %cst {dimension_numbers = #tpu.dot_dimension_numbers<[1], [0], [0], [1], [0, 0, 1, 1], [], []>} : vector<16x32xf32>, vector<32x256xf32>, vector<16x256xf32> -> vector<16x256xf32>
    %c0_4 = arith.constant 0 : index
    %c0_5 = arith.constant 0 : index
    %4 = vector.load %arg3[%c0_4, %c0_5] : memref<1x256xf32, #tpu.memory_space<vmem>>, vector<1x256xf32>
    %5 = vector.broadcast %4 : vector<1x256xf32> to vector<16x256xf32>
    %6 = arith.addf %3, %5 : vector<16x256xf32>
    %7 = vector.extract_strided_slice %6 {offsets = [0, 0], sizes = [16, 128], strides = [1, 1]} : vector<16x256xf32> to vector<16x128xf32>
    %8 = arith.negf %7 : vector<16x128xf32>
    %9 = math.exp %8 : vector<16x128xf32>
    %cst_6 = arith.constant 1.000000e+00 : f32
    %10 = vector.broadcast %cst_6 : f32 to vector<16x128xf32>
    %11 = arith.addf %10, %9 : vector<16x128xf32>
    %12 = arith.divf %10, %11 : vector<16x128xf32>
    %13 = vector.extract_strided_slice %6 {offsets = [0, 128], sizes = [16, 128], strides = [1, 1]} : vector<16x256xf32> to vector<16x128xf32>
    %cst_7 = arith.constant dense<0xFF800000> : vector<16xf32>
    %14 = vector.multi_reduction <maximumf>, %13, %cst_7 [1] : vector<16x128xf32> to vector<16xf32>
    %15 = vector.shape_cast %14 : vector<16xf32> to vector<16x1xf32>
    %16 = vector.broadcast %15 : vector<16x1xf32> to vector<16x128xf32>
    %17 = arith.subf %13, %16 : vector<16x128xf32>
    %18 = math.exp %17 : vector<16x128xf32>
    %cst_8 = arith.constant dense<0.000000e+00> : vector<16xf32>
    %19 = vector.multi_reduction <add>, %18, %cst_8 [1] : vector<16x128xf32> to vector<16xf32>
    %20 = vector.shape_cast %19 : vector<16xf32> to vector<16x1xf32>
    %21 = tpu.reciprocal %20 {approx = true} : vector<16x1xf32> -> vector<16x1xf32>
    %22 = vector.broadcast %21 : vector<16x1xf32> to vector<16x128xf32>
    %23 = arith.mulf %18, %22 : vector<16x128xf32>
    %cst_9 = arith.constant 1.000000e-07 : f32
    %cst_10 = arith.constant 1.000000e+00 : f32
    %24 = vector.broadcast %cst_9 : f32 to vector<16x128xf32>
    %25 = arith.maximumf %24, %23 : vector<16x128xf32>
    %26 = vector.broadcast %cst_10 : f32 to vector<16x128xf32>
    %27 = arith.minimumf %26, %25 : vector<16x128xf32>
    %28 = arith.mulf %12, %27 : vector<16x128xf32>
    %29 = vector.shape_cast %28 : vector<16x128xf32> to vector<2x8x128xf32>
    %cst_11 = arith.constant dense<0.000000e+00> : vector<2x128xf32>
    %30 = vector.multi_reduction <add>, %29, %cst_11 [1] : vector<2x8x128xf32> to vector<2x128xf32>
    %31 = vector.shape_cast %27 : vector<16x128xf32> to vector<2x8x128xf32>
    %cst_12 = arith.constant dense<0.000000e+00> : vector<2x128xf32>
    %32 = vector.multi_reduction <add>, %31, %cst_12 [1] : vector<2x8x128xf32> to vector<2x128xf32>
    %33 = vector.shape_cast %12 : vector<16x128xf32> to vector<2x8x128xf32>
    %c0_13 = arith.constant 0 : index
    %c0_14 = arith.constant 0 : index
    %c0_15 = arith.constant 0 : index
    %34 = vector.load %arg4[%c0_13, %c0_14, %c0_15] : memref<2x8x128xf32, #tpu.memory_space<vmem>>, vector<2x8x128xf32>
    tpu.vector_store %arg4[%c0_13, %c0_14, %c0_15], %33 {strides = array<i32>} : memref<2x8x128xf32, #tpu.memory_space<vmem>>, vector<2x8x128xf32>,
    %35 = tpu.reciprocal %32 {approx = true} : vector<2x128xf32> -> vector<2x128xf32>
    %36 = arith.mulf %30, %35 : vector<2x128xf32>
    %c0_16 = arith.constant 0 : index
    %c0_17 = arith.constant 0 : index
    %37 = vector.load %arg5[%c0_16, %c0_17] : memref<2x128xf32, #tpu.memory_space<vmem>>, vector<2x128xf32>
    tpu.vector_store %arg5[%c0_16, %c0_17], %36 {strides = array<i32>} : memref<2x128xf32, #tpu.memory_space<vmem>>, vector<2x128xf32>,
    return
  }
  func.func @transform_0(%arg0: i32) -> (i32, i32, i32) {
    %c0_i32 = arith.constant 0 : i32
    %c0_i32_0 = arith.constant 0 : i32
    %c0_i32_1 = arith.constant 0 : i32
    return %arg0, %c0_i32, %c0_i32_0 : i32, i32, i32
  }
  func.func @transform_1(%arg0: i32) -> (i32, i32) {
    %c0_i32 = arith.constant 0 : i32
    %c0_i32_0 = arith.constant 0 : i32
    %c0_i32_1 = arith.constant 0 : i32
    return %c0_i32, %c0_i32_0 : i32, i32
  }
  func.func @transform_2(%arg0: i32) -> (i32, i32) {
    %c0_i32 = arith.constant 0 : i32
    %c0_i32_0 = arith.constant 0 : i32
    %c0_i32_1 = arith.constant 0 : i32
    return %c0_i32, %c0_i32_0 : i32, i32
  }
  func.func @transform_3(%arg0: i32) -> (i32, i32, i32) {
    %c0_i32 = arith.constant 0 : i32
    %c0_i32_0 = arith.constant 0 : i32
    %c0_i32_1 = arith.constant 0 : i32
    return %arg0, %c0_i32, %c0_i32_0 : i32, i32, i32
  }
  func.func @transform_4(%arg0: i32) -> (i32, i32) {
    %c0_i32 = arith.constant 0 : i32
    %c0_i32_0 = arith.constant 0 : i32
    return %arg0, %c0_i32 : i32, i32
  }
}

</mosaic_0001>

<llo_original>
// kernel: head_forward.1
$region0: #{head_forward.1}
  #allocation0 [shape = 'u32[]', space=smem, size = 0x4, offset = 0x4, fixed_abs, tag = 'smem constant byte address 0x4 - core index']
  #allocation1 [shape = 'u32[144,128]{1,0:T(1,128)}', space=vmem, size = 0x12000, scoped, tag = 'internal scratch']
  %s0 = inlined_call_operand.vmem [shape: f32[2,8,32], index: 0, kind: input, shape index: {}]
  %s1 = inlined_call_operand.vmem [shape: f32[32,256], index: 1, kind: input, shape index: {}]
  %s2 = inlined_call_operand.vmem [shape: f32[1,256], index: 2, kind: input, shape index: {}]
  %s3 = inlined_call_operand.vmem [shape: f32[2,8,128], index: 3, kind: output, shape index: {0}]
  %s4 = inlined_call_operand.hbm [shape: f32[2,128], index: 4, kind: output, shape index: {1}]
  %5 = xla_tuple %s3, %s4
  %s6 = sld [smem:[#allocation0]]
  $region30: #{head_forward.1} parent=0
    _
  %s8 = ssub.s32 1, %s6
  %s9 = scalar_select 0, %s8, %s6
  $region1: #{head_forward.1} parent=0
    #allocation2 [shape = 'u8[1024]{0}', space=vmem, size = 0x400, scoped, tag = 'output window, operand 1, single buffered']
    #allocation3 [shape = 's32[1]{0}', space=sflag, size = 0x4, scoped, tag = 'scoped memory for head_forward.1']
    %10 = vsyncpa [#allocation3], 0
    // Predicated region
    $region2: #{head_forward.1} parent=1 // pred_check
      _
    $region3: #{head_forward.1} parent=1 // pred_check_branch
      %12 = sbr.rel (0) target = $region5
    $region4: #{head_forward.1} parent=1 // pred_region
      _
    $region5: #{head_forward.1} parent=1 // pred_fallthru
      _
    // Predicated region
    $region6: #{head_forward.1} parent=1 // pred_check
      _
    $region7: #{head_forward.1} parent=1 // pred_check_branch
      %14 = sbr.rel (0) target = $region9
    $region8: #{head_forward.1} parent=1 // pred_region
      _
    $region9: #{head_forward.1} parent=1 // pred_fallthru
      _
    // Predicated region
    $region10: #{head_forward.1} parent=1 // pred_check
      _
    $region11: #{head_forward.1} parent=1 // pred_check_branch
      %16 = sbr.rel (0) target = $region13
    $region12: #{head_forward.1} parent=1 // pred_region
      _
    $region13: #{head_forward.1} parent=1 // pred_fallthru
      _
    %v17 = vld [vmem:[%s0] sm:$0xff]
    %v18 = vld [vmem:[%s0 + $0x8] sm:$0xff]
    %v19 = vld [vmem:[%s1] sm:$0xff]
    %v20 = vld [vmem:[%s1 + $0x8] sm:$0xff]
    %v21 = vld [vmem:[%s1 + $0x10] sm:$0xff]
    %v22 = vld [vmem:[%s1 + $0x18] sm:$0xff]
    %v23 = vld [vmem:[%s1 + $0x20] sm:$0xff]
    %v24 = vld [vmem:[%s1 + $0x28] sm:$0xff]
    %v25 = vld [vmem:[%s1 + $0x30] sm:$0xff]
    %v26 = vld [vmem:[%s1 + $0x38] sm:$0xff]
    %v27 = vld [vmem:[%s2] sm:$0x3]
    %v29 = vlaneseq
    %v30 = vshrl.u32 %v29, 7
    %v31 = vsub.s32 0, %v30
    %v32 = vrot.slane %v27, %v31
    %v33 = vlaneseq
    %v34 = vshrl.u32 %v33, 7
    %v35 = vsub.s32 1, %v34
    %v36 = vrot.slane %v27, %v35
    %vm39 = vcmask 261120
    %v41 = vsel %vm39, %v17, 0
    %v44 = vsel %vm39, %v18, 0
    %46 = vmatprep.subr.mxu0 0.0
    %47 = vmatpush1.msra.mxu0 0.0
    %48 = vmatprep.subr.mxu0 0.0
    %49 = vmatpush1.msra.mxu0 0.0
    %50 = vmatprep.subr.mxu0 0.0
    %51 = vmatpush1.msra.mxu0 0.0
    %52 = vmatprep.subr.mxu0 0.0
    %53 = vmatpush1.msra.mxu0 0.0
    %54 = vmatprep.subr.mxu0 0.0
    %55 = vmatpush1.msra.mxu0 0.0
    %56 = vmatprep.subr.mxu0 0.0
    %57 = vmatpush1.msra.mxu0 0.0
    %58 = vmatprep.subr.mxu0 0.0
    %59 = vmatpush1.msra.mxu0 0.0
    %60 = vmatprep.subr.mxu0 0.0
    %61 = vmatpush1.msra.mxu0 0.0
    %62 = vmatprep.subr.mxu0 0.0
    %63 = vmatpush1.msra.mxu0 0.0
    %64 = vmatprep.subr.mxu0 0.0
    %65 = vmatpush1.msra.mxu0 0.0
    %66 = vmatprep.subr.mxu0 0.0
    %67 = vmatpush1.msra.mxu0 0.0
    %68 = vmatprep.subr.mxu0 0.0
    %69 = vmatpush1.msra.mxu0 0.0
    %70 = vmatprep.subr.mxu0 %v26
    %71 = vmatpush1.msra.mxu0 %v25
    %72 = vmatprep.subr.mxu0 %v24
    %73 = vmatpush1.msra.mxu0 %v23
    %74 = vmatprep.subr.mxu0 %v22
    %75 = vmatpush1.msra.mxu0 %v21
    %76 = vmatprep.subr.mxu0 %v20
    %77 = vmatpush1.msra.mxu0 %v19
    %78 = vmatprep.subr.mxu0 0.0
    %79 = vmatpush2.msra.mxu0 0.0
    %80 = vmatprep.subr.mxu0 0.0
    %81 = vmatpush2.msra.mxu0 0.0
    %82 = vmatprep.subr.mxu0 0.0
    %83 = vmatpush2.msra.mxu0 0.0
    %84 = vmatprep.subr.mxu0 0.0
    %85 = vmatpush2.msra.mxu0 0.0
    %86 = vmatprep.subr.mxu0 0.0
    %87 = vmatpush2.msra.mxu0 0.0
    %88 = vmatprep.subr.mxu0 0.0
    %89 = vmatpush2.msra.mxu0 0.0
    %90 = vmatprep.subr.mxu0 0.0
    %91 = vmatpush2.msra.mxu0 0.0
    %92 = vmatprep.subr.mxu0 0.0
    %93 = vmatpush2.msra.mxu0 0.0
    %94 = vmatprep.subr.mxu0 0.0
    %95 = vmatpush2.msra.mxu0 0.0
    %96 = vmatprep.subr.mxu0 0.0
    %97 = vmatpush2.msra.mxu0 0.0
    %98 = vmatprep.subr.mxu0 0.0
    %99 = vmatpush2.msra.mxu0 0.0
    %100 = vmatprep.subr.mxu0 0.0
    %101 = vmatpush2.msra.mxu0 0.0
    %102 = vmatprep.subr.mxu0 0.0
    %103 = vmatpush2.msra.mxu0 0.0
    %104 = vmatprep.subr.mxu0 0.0
    %105 = vmatpush2.msra.mxu0 0.0
    %106 = vmatprep.subr.mxu0 0.0
    %107 = vmatpush2.msra.mxu0 0.0
    %108 = vmatprep.subr.mxu0 0.0
    %109 = vmatpush2.msra.mxu0 0.0
    %110 = vmatprep.mubr.f32.mxu0 0.0
    %111 = vmatmul.mubr.f32.gmra.mxu0 %v41
    %v112 = vpop.f32.mrf.mxu0
    %v113 = vadd.f32 %v32, %v112
    %v114 = vpop.f32.mrf.mxu0
    %v115 = vadd.f32 %v36, %v114
    %116 = vmatprep.mubr.f32.mxu0 0.0
    %117 = vmatmul.mubr.f32.gmra.mxu0 %v44
    %v118 = vpop.f32.mrf.mxu0
    %v119 = vadd.f32 %v32, %v118
    %v120 = vpop.f32.mrf.mxu0
    %v121 = vadd.f32 %v36, %v120
    %122 = vdwg.mxu0
    %v123 = vxor.u32 %v113, 2147483648
    %v124 = vxor.u32 %v119, 2147483648
    %v125 = vmul.f32 %v123, 1.442695
    %v126 = vpow.pop %v125
    %v127 = vmul.f32 %v124, 1.442695
    %v128 = vpow.pop %v127
    %v129 = vadd.f32 %v126, 1.0
    %v130 = vadd.f32 %v128, 1.0
    %v131 = vrcp.pop %v129
    %v132 = vmul.f32 1.0, %v131
    %v133 = vrcp.pop %v130
    %v134 = vmul.f32 1.0, %v133
    %135 = vmax.xlane.f32.xlu0 %v115
    %v136 = vpop.xlane.xlu0 %135
    %137 = vmax.xlane.f32.xlu0 %v121
    %v138 = vpop.xlane.xlu0 %137
    %v139 = vsub.f32 %v115, %v136
    %v140 = vsub.f32 %v121, %v138
    %v141 = vmul.f32 %v139, 1.442695
    %v142 = vpow.pop %v141
    %v143 = vmul.f32 %v140, 1.442695
    %v144 = vpow.pop %v143
    %145 = vadd.xlane.f32.xlu0 %v142
    %v146 = vpop.xlane.xlu0 %145
    %147 = vadd.xlane.f32.xlu0 %v144
    %v148 = vpop.xlane.xlu0 %147
    %v149 = vrcp.pop %v146
    %v150 = vrcp.pop %v148
    %v151 = vmul.f32 %v142, %v149
    %v152 = vmul.f32 %v144, %v150
    %v153 = vmax.f32 %v151, 1e-07
    %v154 = vmax.f32 %v152, 1e-07
    %v155 = vmin.f32 %v153, 1.0
    %v156 = vmin.f32 %v154, 1.0
    %v157 = vmul.f32 %v132, %v155
    %v158 = vmul.f32 %v134, %v156
    %v159 = vrot.slane %v157, 4
    %v160 = vadd.f32 %v157, %v159
    %v161 = vrot.slane %v160, 2
    %v162 = vadd.f32 %v160, %v161
    %v163 = vrot.slane %v162, 1
    %v164 = vadd.f32 %v162, %v163
    %v165 = vrot.slane %v158, 4
    %v166 = vadd.f32 %v158, %v165
    %v167 = vrot.slane %v166, 2
    %v168 = vadd.f32 %v166, %v167
    %v169 = vrot.slane %v168, 1
    %v170 = vadd.f32 %v168, %v169
    %v171 = vrot.slane %v155, 4
    %v172 = vadd.f32 %v155, %v171
    %v173 = vrot.slane %v172, 2
    %v174 = vadd.f32 %v172, %v173
    %v175 = vrot.slane %v174, 1
    %v176 = vadd.f32 %v174, %v175
    %v177 = vrot.slane %v156, 4
    %v178 = vadd.f32 %v156, %v177
    %v179 = vrot.slane %v178, 2
    %v180 = vadd.f32 %v178, %v179
    %v181 = vrot.slane %v180, 1
    %v182 = vadd.f32 %v180, %v181
    %183 = vst [vmem:[%s3] sm:$0xff] %v132
    %184 = vst [vmem:[%s3 + $0x8] sm:$0xff] %v134
    %v185 = vrcp.pop %v176
    %v186 = vrcp.pop %v182
    %v187 = vmul.f32 %v164, %v185
    %v188 = vmul.f32 %v170, %v186
    %vm191 = vcmask 1041409
    %v192 = vsel %vm191, %v188, %v187
    %194 = vst [vmem:[#allocation2] sm:$0x3] %v192
    // Predicated region
    $region14: #{head_forward.1} parent=1 // pred_check
      _
    $region15: #{head_forward.1} parent=1 // pred_check_branch
      %196 = sbr.rel (0) target = $region17
    $region16: #{head_forward.1} parent=1 // pred_region
      _
    $region17: #{head_forward.1} parent=1 // pred_fallthru
      _
    // Predicated region
    $region18: #{head_forward.1} parent=1 // pred_check
      _
    $region19: #{head_forward.1} parent=1 // pred_check_branch
      %198 = sbr.rel (0) target = $region21
    $region20: #{head_forward.1} parent=1 // pred_region
      %s200 = ssub.s32 32, 32
      %201 = vsyncadd [#allocation3], %s200
      %s203 = sshll.u32 [#allocation2], 4
      %s204 = int_to_ptr.vmem [resolvable:$true] %s203
      %206 = dma.vmem_to_hbm [thread:$0]  %s204, 32, %s4, [#allocation3]
    $region21: #{head_forward.1} parent=1 // pred_fallthru
      _
    // Predicated region
    $region22: #{head_forward.1} parent=1 // pred_check
      _
    $region23: #{head_forward.1} parent=1 // pred_check_branch
      %208 = sbr.rel (0) target = $region25
    $region24: #{head_forward.1} parent=1 // pred_region
      _
    $region25: #{head_forward.1} parent=1 // pred_fallthru
      _
    // Predicated region
    $region26: #{head_forward.1} parent=1 // pred_check
      _
    $region27: #{head_forward.1} parent=1 // pred_check_branch
      %210 = sbr.rel (0) target = $region29
    $region28: #{head_forward.1} parent=1 // pred_region
      %211 = dma.done [#allocation3], 32
    $region29: #{head_forward.1} parent=1 // pred_fallthru
      _
    %212 = vsyncpa [#allocation3], 1

</llo_original>
